<compile_context>
chip_gen: v7x
topology: tpu7x:2x2x1
jax: 0.10.0
libtpu: 0.0.40
codegen_flags: <defaults>
</compile_context>

<pallas_src>
import math
import warnings

import jax
import jax.numpy as jnp
from jax.experimental import pallas as pl
from jax.experimental.pallas import tpu as pltpu


# ----------------------------------------------------------------------------
# Kernel
# ----------------------------------------------------------------------------
def adapter_kernel(x_ref, wd_ref, bd_ref, wu_ref, bu_ref, o_ref):
    """relu(x @ Wd + bd) @ Wu + bu + x  on one (tm, Hp) row tile.

    x_ref : (tm, Hp)  activation row tile
    wd_ref: (Hp, Dp)  down-proj weight, pre-transposed to (in, out) layout
    bd_ref: (1, Dp)   down-proj bias (f32, padded)
    wu_ref: (Dp, Hp)  up-proj weight, pre-transposed to (in, out) layout
    bu_ref: (1, Hp)   up-proj bias (f32, padded)
    o_ref : (tm, Hp)
    """
    x = x_ref[...]

    # Both contractions hit the RHS major (sublane) dim -> no in-kernel weight
    # transpose; weights are grid-invariant and resident in VMEM.
    h = jnp.dot(x, wd_ref[...], preferred_element_type=jnp.float32)
    h = jnp.maximum(h + bd_ref[...], 0.0)                       # bias + ReLU (f32)

    y = jnp.dot(h.astype(wu_ref.dtype), wu_ref[...],
                preferred_element_type=jnp.float32)

    # Bias add in f32, then residual add in the OUTPUT dtype: on v6e/v7x the
    # bf16 VALU halves the packed epilogue op count and drops the f32 copy of
    # x; identical math when the output dtype is f32.
    o_ref[...] = (y + bu_ref[...]).astype(o_ref.dtype) + x


# ----------------------------------------------------------------------------
# Sizing helpers
# ----------------------------------------------------------------------------
def _round_up(n, m):
    return ((n + m - 1) // m) * m


def _vmem_bytes(tm, Hp, Dp, act_bytes, w_bytes, x_bufs=2, out_bufs=2):
    """Per-step VMEM footprint: buffered activations, single-buffered resident
    weights, f32 intermediates (h, y).  No f32 residual copy (epilogue adds in
    the output dtype)."""
    return (x_bufs * tm * Hp * act_bytes          # x tiles
            + out_bufs * tm * Hp * act_bytes      # out tiles
            + 2 * Hp * Dp * w_bytes               # wd + wu (resident, 1-buffered)
            + (Dp + Hp) * 4                       # biases (f32)
            + tm * Dp * 4 + tm * Hp * 4)          # f32 intermediates h, y


def _pick_tm(M, Hp, Dp, act_bytes, w_bytes, target_tm, vmem_budget,
             min_steps=4):
    if M <= 256:
        return M                                   # one block covers all rows
    tm = min(_round_up(target_tm, 256), _round_up(M, 256))
    while tm > 256 and _vmem_bytes(tm, Hp, Dp, act_bytes, w_bytes) > vmem_budget:
        tm -= 256
    # Keep >= min_steps grid steps when there is enough work:
    #  - v7x (2 TCs): >= 2 steps per core so input DMA / compute / writeback
    #    overlap instead of serializing,
    #  - v5e/v6e (1 TC): >= 4 steps gives steady-state double-buffering.
    while tm > 256 and pl.cdiv(M, tm) < min_steps:
        tm -= 256
    return tm


# ----------------------------------------------------------------------------
# One-time (init) parameter preprocessing
# ----------------------------------------------------------------------------
def prepare_adapter_params(w_down, b_down, w_up, b_up, *,
                           compute_dtype=jnp.float32):
    """Hoisted out of the forward pass (model-init in a real model):
      * cast weights to the activation compute dtype,
      * transpose to (in, out) layout so the kernel contracts the RHS major
        dim (no XLU transpose of resident weights inside the kernel),
      * zero-pad D and H to multiples of 128 (lane-dense, MXU-aligned;
        numerically exact: padded lanes stay zero through relu and the
        padded weight rows/cols are zero).
    """
    D, H = w_down.shape
    assert w_up.shape == (H, D) and b_down.shape == (D,) and b_up.shape == (H,)
    Dp = _round_up(D, 128)
    Hp = _round_up(H, 128)
    wd = jnp.pad(w_down.astype(compute_dtype).T, ((0, Hp - H), (0, Dp - D)))  # (Hp, Dp)
    wu = jnp.pad(w_up.astype(compute_dtype).T, ((0, Dp - D), (0, Hp - H)))    # (Dp, Hp)
    bd = jnp.pad(b_down.astype(jnp.float32), (0, Dp - D)).reshape(1, Dp)
    bu = jnp.pad(b_up.astype(jnp.float32), (0, Hp - H)).reshape(1, Hp)
    return {"wd": wd, "bd": bd, "wu": wu, "bu": bu,
            "H": H, "D": D, "Hp": Hp, "Dp": Dp}


# ----------------------------------------------------------------------------
# Forward
# ----------------------------------------------------------------------------
def adapter_forward(x, params):
    """Pallas TPU forward for Adapter: relu(x @ Wd^T + bd) @ Wu^T + bu + x,
    using parameters preprocessed once by `prepare_adapter_params`."""
    wd, bd, wu, bu = params["wd"], params["bd"], params["wu"], params["bu"]
    H, Hp, Dp = params["H"], params["Hp"], params["Dp"]

    orig_shape = x.shape
    assert orig_shape[-1] == H, "input hidden dim does not match adapter params"
    M = math.prod(orig_shape[:-1])
    x2d = x.reshape(M, H)
    if Hp != H:
        # Production H should already be a multiple of 128 (lane-dense stores);
        # pad only for odd sizes and slice the result back afterwards (exact).
        x2d = jnp.pad(x2d, ((0, 0), (0, Hp - H)))

    act_bytes = x2d.dtype.itemsize
    w_bytes = wd.dtype.itemsize

    # Per-core VMEM capacity.
    # TODO(synk): confirm get_tpu_info reports per-TensorCore VMEM on 2-TC
    # (v7x) parts; clamp to 128 MiB (largest per-core across generations).
    try:
        vmem_cap = int(pltpu.get_tpu_info().vmem_capacity_bytes)
    except (AttributeError, NotImplementedError, RuntimeError, ValueError):
        vmem_cap = 64 * 1024 * 1024          # assume smallest (v7x: 64 MiB/TC)
    vmem_cap = min(vmem_cap, 128 * 1024 * 1024)
    vmem_budget = int(0.7 * vmem_cap)

    # Chip-aware row tile: 1024 on 128 MiB parts (v5e/v6e), 512 on 64 MiB/TC.
    target_tm = 1024 if vmem_cap >= 100 * 1024 * 1024 else 512
    tm = _pick_tm(M, Hp, Dp, act_bytes, w_bytes, target_tm, vmem_budget)

    # Triple-buffer the x stream on 128 MiB parts when there is headroom and a
    # deep enough grid (hides DMA issue jitter on the most mem-bound chips).
    x_bufs = 2
    if (vmem_cap >= 100 * 1024 * 1024 and pl.cdiv(M, tm) >= 3
            and _vmem_bytes(tm, Hp, Dp, act_bytes, w_bytes, x_bufs=3)
                <= vmem_budget):
        x_bufs = 3

    est = _vmem_bytes(tm, Hp, Dp, act_bytes, w_bytes, x_bufs=x_bufs)
    vmem_limit = min(int(0.9 * vmem_cap),
                     max(32 * 1024 * 1024, est + 16 * 1024 * 1024))

    grid = (pl.cdiv(M, tm),)
    cost = pl.CostEstimate(
        flops=4 * M * Hp * Dp,
        bytes_accessed=2 * M * Hp * act_bytes + 2 * Dp * Hp * w_bytes,
        transcendentals=0)

    def build(single_buffer_weights, n_x_bufs):
        # Weights / biases never change across the grid (constant index_map);
        # single-buffering them halves their VMEM residency.
        if single_buffer_weights:
            w_spec = lambda s: pl.BlockSpec(s, lambda i: (0,) * len(s),
                                            pipeline_mode=pl.Buffered(1))
        else:
            w_spec = lambda s: pl.BlockSpec(s, lambda i: (0,) * len(s))
        if n_x_bufs > 2:
            x_spec = pl.BlockSpec((tm, Hp), lambda i: (i, 0),
                                  pipeline_mode=pl.Buffered(n_x_bufs))
        else:
            x_spec = pl.BlockSpec((tm, Hp), lambda i: (i, 0))
        return pl.pallas_call(
            adapter_kernel,
            out_shape=jax.ShapeDtypeStruct((M, Hp), x2d.dtype),
            grid_spec=pltpu.PrefetchScalarGridSpec(
                num_scalar_prefetch=0,
                grid=grid,
                in_specs=[
                    x_spec,                 # x row tile (pipelined)
                    w_spec((Hp, Dp)),       # down-proj weight (resident)
                    w_spec((1, Dp)),        # down-proj bias
                    w_spec((Dp, Hp)),       # up-proj weight (resident)
                    w_spec((1, Hp)),        # up-proj bias
                ],
                out_specs=pl.BlockSpec((tm, Hp), lambda i: (i, 0)),
            ),
            compiler_params=pltpu.CompilerParams(
                dimension_semantics=("parallel",),
                vmem_limit_bytes=vmem_limit,
            ),
            cost_estimate=cost,
        )

    try:
        out2d = build(True, x_bufs)(x2d, wd, bd, wu, bu)
    except Exception as e:  # pragma: no cover
        # Loud, last-resort fallback only for jax versions that reject
        # pipeline_mode=pl.Buffered.  Default double-buffering roughly doubles
        # weight VMEM residency, so surface it instead of failing silently.
        warnings.warn(
            "pl.Buffered pipeline_mode rejected (%r); retrying with default "
            "double-buffered BlockSpecs." % (e,))
        out2d = build(False, 2)(x2d, wd, bd, wu, bu)

    if Hp != H:
        out2d = out2d[:, :H]
    return out2d.reshape(orig_shape)


# ----------------------------------------------------------------------------
# Demo / correctness check
# ----------------------------------------------------------------------------
if __name__ == "__main__":
    # Shapes implied by the module: x (batch, seq, hidden), bottleneck_dim=64.
    B, S, H, D = 2, 8, 32, 64
    key = jax.random.PRNGKey(0)
    kx, kwd, kbd, kwu, kbu = jax.random.split(key, 5)

    x = jax.random.normal(kx, (B, S, H), dtype=jnp.float32)
    # PyTorch nn.Linear parameter layout: weight (out, in), bias (out,).
    w_down = jax.random.normal(kwd, (D, H), dtype=jnp.float32) * 0.05
    b_down = jax.random.normal(kbd, (D,), dtype=jnp.float32) * 0.05
    w_up = jax.random.normal(kwu, (H, D), dtype=jnp.float32) * 0.05
    b_up = jax.random.normal(kbu, (H,), dtype=jnp.float32) * 0.05

    def reference(xr):
        h = jnp.maximum(xr @ w_down.T + b_down, 0.0)
        return h @ w_up.T + b_up + xr

    # One-time weight preprocessing (init-time in a real model, not per call).
    params_f32 = prepare_adapter_params(w_down, b_down, w_up, b_up,
                                        compute_dtype=jnp.float32)
    params_bf16 = prepare_adapter_params(w_down, b_down, w_up, b_up,
                                         compute_dtype=jnp.bfloat16)

    # 1) f32 path, tight tolerance.
    out = jax.block_until_ready(adapter_forward(x, params_f32))
    assert out.shape == (B, S, H)
    assert jnp.allclose(out, reference(x), atol=1e-5, rtol=1e-5)

    # 2) bf16 path (mem-bound production config), looser tolerance.
    out_bf16 = jax.block_until_ready(
        adapter_forward(x.astype(jnp.bfloat16), params_bf16))
    assert out_bf16.dtype == jnp.bfloat16
    assert jnp.allclose(out_bf16.astype(jnp.float32), reference(x),
                        atol=5e-2, rtol=5e-2)

    # 3) M not a multiple of the row tile: exercises the masked last row block
    #    and a multi-step parallel grid (M = 300 -> tm = 256, grid = 2).
    x3 = jax.random.normal(jax.random.PRNGKey(1), (3, 100, H), dtype=jnp.float32)
    out3 = jax.block_until_ready(adapter_forward(x3, params_f32))
    assert out3.shape == x3.shape
    assert jnp.allclose(out3, reference(x3), atol=1e-5, rtol=1e-5)

    print("KERNEL_OK")
</pallas_src>

<mosaic_0001>
module attributes {stable_mosaic.version = 11 : i64} {
  func.func @adapter_kernel(%arg0: i32, %arg1: memref<16x128xf32, #tpu.memory_space<vmem>>, %arg2: memref<128x128xf32, #tpu.memory_space<vmem>>, %arg3: memref<1x128xf32, #tpu.memory_space<vmem>>, %arg4: memref<128x128xf32, #tpu.memory_space<vmem>>, %arg5: memref<1x128xf32, #tpu.memory_space<vmem>>, %arg6: memref<16x128xf32, #tpu.memory_space<vmem>>) attributes {dimension_semantics = [#tpu.dimension_semantics<parallel>], iteration_bounds = array<i64: 1>, scalar_prefetch = 0 : i64, scratch_operands = 0 : i64, tpu.core_type = #tpu.core_type<tc>, window_params = [{transform_indices = @transform_0, window_bounds = array<i64: 16, 128>}, {pipeline_mode = #tpu.pipeline_mode<synchronous>, transform_indices = @transform_1, window_bounds = array<i64: 128, 128>}, {pipeline_mode = #tpu.pipeline_mode<synchronous>, transform_indices = @transform_2, window_bounds = array<i64: 1, 128>}, {pipeline_mode = #tpu.pipeline_mode<synchronous>, transform_indices = @transform_3, window_bounds = array<i64: 128, 128>}, {pipeline_mode = #tpu.pipeline_mode<synchronous>, transform_indices = @transform_4, window_bounds = array<i64: 1, 128>}, {transform_indices = @transform_5, window_bounds = array<i64: 16, 128>}]} {
    %c0 = arith.constant 0 : index
    %c0_0 = arith.constant 0 : index
    %0 = vector.load %arg1[%c0, %c0_0] : memref<16x128xf32, #tpu.memory_space<vmem>>, vector<16x128xf32>
    %c0_1 = arith.constant 0 : index
    %c0_2 = arith.constant 0 : index
    %1 = vector.load %arg2[%c0_1, %c0_2] : memref<128x128xf32, #tpu.memory_space<vmem>>, vector<128x128xf32>
    %cst = arith.constant dense<0.000000e+00> : vector<16x128xf32>
    %2 = tpu.matmul %0, %1, %cst {dimension_numbers = #tpu.dot_dimension_numbers<[1], [0], [0], [1], [0, 0, 1, 1], [], []>} : vector<16x128xf32>, vector<128x128xf32>, vector<16x128xf32> -> vector<16x128xf32>
    %c0_3 = arith.constant 0 : index
    %c0_4 = arith.constant 0 : index
    %3 = vector.load %arg3[%c0_3, %c0_4] : memref<1x128xf32, #tpu.memory_space<vmem>>, vector<1x128xf32>
    %4 = vector.broadcast %3 : vector<1x128xf32> to vector<16x128xf32>
    %5 = arith.addf %2, %4 : vector<16x128xf32>
    %cst_5 = arith.constant 0.000000e+00 : f32
    %6 = vector.broadcast %cst_5 : f32 to vector<16x128xf32>
    %7 = arith.maximumf %5, %6 : vector<16x128xf32>
    %c0_6 = arith.constant 0 : index
    %c0_7 = arith.constant 0 : index
    %8 = vector.load %arg4[%c0_6, %c0_7] : memref<128x128xf32, #tpu.memory_space<vmem>>, vector<128x128xf32>
    %cst_8 = arith.constant dense<0.000000e+00> : vector<16x128xf32>
    %9 = tpu.matmul %7, %8, %cst_8 {dimension_numbers = #tpu.dot_dimension_numbers<[1], [0], [0], [1], [0, 0, 1, 1], [], []>} : vector<16x128xf32>, vector<128x128xf32>, vector<16x128xf32> -> vector<16x128xf32>
    %c0_9 = arith.constant 0 : index
    %c0_10 = arith.constant 0 : index
    %10 = vector.load %arg5[%c0_9, %c0_10] : memref<1x128xf32, #tpu.memory_space<vmem>>, vector<1x128xf32>
    %11 = vector.broadcast %10 : vector<1x128xf32> to vector<16x128xf32>
    %12 = arith.addf %9, %11 : vector<16x128xf32>
    %13 = arith.addf %12, %0 : vector<16x128xf32>
    %c0_11 = arith.constant 0 : index
    %c0_12 = arith.constant 0 : index
    %14 = vector.load %arg6[%c0_11, %c0_12] : memref<16x128xf32, #tpu.memory_space<vmem>>, vector<16x128xf32>
    tpu.vector_store %arg6[%c0_11, %c0_12], %13 {strides = array<i32>} : memref<16x128xf32, #tpu.memory_space<vmem>>, vector<16x128xf32>,
    return
  }
  func.func @transform_0(%arg0: i32) -> (i32, i32) {
    %c0_i32 = arith.constant 0 : i32
    %c0_i32_0 = arith.constant 0 : i32
    return %arg0, %c0_i32 : i32, i32
  }
  func.func @transform_1(%arg0: i32) -> (i32, i32) {
    %c0_i32 = arith.constant 0 : i32
    %c0_i32_0 = arith.constant 0 : i32
    %c0_i32_1 = arith.constant 0 : i32
    return %c0_i32, %c0_i32_0 : i32, i32
  }
  func.func @transform_2(%arg0: i32) -> (i32, i32) {
    %c0_i32 = arith.constant 0 : i32
    %c0_i32_0 = arith.constant 0 : i32
    %c0_i32_1 = arith.constant 0 : i32
    return %c0_i32, %c0_i32_0 : i32, i32
  }
  func.func @transform_3(%arg0: i32) -> (i32, i32) {
    %c0_i32 = arith.constant 0 : i32
    %c0_i32_0 = arith.constant 0 : i32
    %c0_i32_1 = arith.constant 0 : i32
    return %c0_i32, %c0_i32_0 : i32, i32
  }
  func.func @transform_4(%arg0: i32) -> (i32, i32) {
    %c0_i32 = arith.constant 0 : i32
    %c0_i32_0 = arith.constant 0 : i32
    %c0_i32_1 = arith.constant 0 : i32
    return %c0_i32, %c0_i32_0 : i32, i32
  }
  func.func @transform_5(%arg0: i32) -> (i32, i32) {
    %c0_i32 = arith.constant 0 : i32
    %c0_i32_0 = arith.constant 0 : i32
    return %arg0, %c0_i32 : i32, i32
  }
}

module attributes {stable_mosaic.version = 11 : i64} {
  func.func @adapter_kernel(%arg0: i32, %arg1: memref<16x128xf32, #tpu.memory_space<vmem>>, %arg2: memref<128x128xf32, #tpu.memory_space<vmem>>, %arg3: memref<1x128xf32, #tpu.memory_space<vmem>>, %arg4: memref<128x128xf32, #tpu.memory_space<vmem>>, %arg5: memref<1x128xf32, #tpu.memory_space<vmem>>, %arg6: memref<16x128xf32, #tpu.memory_space<vmem>>) attributes {dimension_semantics = [#tpu.dimension_semantics<parallel>], iteration_bounds = array<i64: 1>, scalar_prefetch = 0 : i64, scratch_operands = 0 : i64, tpu.core_type = #tpu.core_type<tc>, window_params = [{transform_indices = @transform_0, window_bounds = array<i64: 16, 128>}, {pipeline_mode = #tpu.pipeline_mode<synchronous>, transform_indices = @transform_1, window_bounds = array<i64: 128, 128>}, {pipeline_mode = #tpu.pipeline_mode<synchronous>, transform_indices = @transform_2, window_bounds = array<i64: 1, 128>}, {pipeline_mode = #tpu.pipeline_mode<synchronous>, transform_indices = @transform_3, window_bounds = array<i64: 128, 128>}, {pipeline_mode = #tpu.pipeline_mode<synchronous>, transform_indices = @transform_4, window_bounds = array<i64: 1, 128>}, {transform_indices = @transform_5, window_bounds = array<i64: 16, 128>}]} {
    %c0 = arith.constant 0 : index
    %c0_0 = arith.constant 0 : index
    %0 = vector.load %arg1[%c0, %c0_0] : memref<16x128xf32, #tpu.memory_space<vmem>>, vector<16x128xf32>
    %c0_1 = arith.constant 0 : index
    %c0_2 = arith.constant 0 : index
    %1 = vector.load %arg2[%c0_1, %c0_2] : memref<128x128xf32, #tpu.memory_space<vmem>>, vector<128x128xf32>
    %cst = arith.constant dense<0.000000e+00> : vector<16x128xf32>
    %2 = tpu.matmul %0, %1, %cst {dimension_numbers = #tpu.dot_dimension_numbers<[1], [0], [0], [1], [0, 0, 1, 1], [], []>} : vector<16x128xf32>, vector<128x128xf32>, vector<16x128xf32> -> vector<16x128xf32>
    %c0_3 = arith.constant 0 : index
    %c0_4 = arith.constant 0 : index
    %3 = vector.load %arg3[%c0_3, %c0_4] : memref<1x128xf32, #tpu.memory_space<vmem>>, vector<1x128xf32>
    %4 = vector.broadcast %3 : vector<1x128xf32> to vector<16x128xf32>
    %5 = arith.addf %2, %4 : vector<16x128xf32>
    %cst_5 = arith.constant 0.000000e+00 : f32
    %6 = vector.broadcast %cst_5 : f32 to vector<16x128xf32>
    %7 = arith.maximumf %5, %6 : vector<16x128xf32>
    %c0_6 = arith.constant 0 : index
    %c0_7 = arith.constant 0 : index
    %8 = vector.load %arg4[%c0_6, %c0_7] : memref<128x128xf32, #tpu.memory_space<vmem>>, vector<128x128xf32>
    %cst_8 = arith.constant dense<0.000000e+00> : vector<16x128xf32>
    %9 = tpu.matmul %7, %8, %cst_8 {dimension_numbers = #tpu.dot_dimension_numbers<[1], [0], [0], [1], [0, 0, 1, 1], [], []>} : vector<16x128xf32>, vector<128x128xf32>, vector<16x128xf32> -> vector<16x128xf32>
    %c0_9 = arith.constant 0 : index
    %c0_10 = arith.constant 0 : index
    %10 = vector.load %arg5[%c0_9, %c0_10] : memref<1x128xf32, #tpu.memory_space<vmem>>, vector<1x128xf32>
    %11 = vector.broadcast %10 : vector<1x128xf32> to vector<16x128xf32>
    %12 = arith.addf %9, %11 : vector<16x128xf32>
    %13 = arith.addf %12, %0 : vector<16x128xf32>
    %c0_11 = arith.constant 0 : index
    %c0_12 = arith.constant 0 : index
    %14 = vector.load %arg6[%c0_11, %c0_12] : memref<16x128xf32, #tpu.memory_space<vmem>>, vector<16x128xf32>
    tpu.vector_store %arg6[%c0_11, %c0_12], %13 {strides = array<i32>} : memref<16x128xf32, #tpu.memory_space<vmem>>, vector<16x128xf32>,
    return
  }
  func.func @transform_0(%arg0: i32) -> (i32, i32) {
    %c0_i32 = arith.constant 0 : i32
    %c0_i32_0 = arith.constant 0 : i32
    return %arg0, %c0_i32 : i32, i32
  }
  func.func @transform_1(%arg0: i32) -> (i32, i32) {
    %c0_i32 = arith.constant 0 : i32
    %c0_i32_0 = arith.constant 0 : i32
    %c0_i32_1 = arith.constant 0 : i32
    return %c0_i32, %c0_i32_0 : i32, i32
  }
  func.func @transform_2(%arg0: i32) -> (i32, i32) {
    %c0_i32 = arith.constant 0 : i32
    %c0_i32_0 = arith.constant 0 : i32
    %c0_i32_1 = arith.constant 0 : i32
    return %c0_i32, %c0_i32_0 : i32, i32
  }
  func.func @transform_3(%arg0: i32) -> (i32, i32) {
    %c0_i32 = arith.constant 0 : i32
    %c0_i32_0 = arith.constant 0 : i32
    %c0_i32_1 = arith.constant 0 : i32
    return %c0_i32, %c0_i32_0 : i32, i32
  }
  func.func @transform_4(%arg0: i32) -> (i32, i32) {
    %c0_i32 = arith.constant 0 : i32
    %c0_i32_0 = arith.constant 0 : i32
    %c0_i32_1 = arith.constant 0 : i32
    return %c0_i32, %c0_i32_0 : i32, i32
  }
  func.func @transform_5(%arg0: i32) -> (i32, i32) {
    %c0_i32 = arith.constant 0 : i32
    %c0_i32_0 = arith.constant 0 : i32
    return %arg0, %c0_i32 : i32, i32
  }
}

</mosaic_0001>

<llo_original>
// kernel: tpu_custom_call.1
$region0: #{tpu_custom_call.1}
  #allocation0 [shape = 'u32[]', space=smem, size = 0x4, offset = 0x4, fixed_abs, tag = 'smem constant byte address 0x4 - core index']
  #allocation1 [shape = 'u32[144,128]{1,0:T(1,128)}', space=vmem, size = 0x12000, scoped, tag = 'internal scratch']
  %s0 = inlined_call_operand.hbm [shape: f32[16,128], index: 0, kind: input, shape index: {}]
  %s1 = inlined_call_operand.hbm [shape: f32[128,128], index: 1, kind: input, shape index: {}]
  %s2 = inlined_call_operand.vmem [shape: f32[1,128], index: 2, kind: input, shape index: {}]
  %s3 = inlined_call_operand.hbm [shape: f32[128,128], index: 3, kind: input, shape index: {}]
  %s4 = inlined_call_operand.vmem [shape: f32[1,128], index: 4, kind: input, shape index: {}]
  %s5 = inlined_call_operand.hbm [shape: f32[16,128], index: 5, kind: output, shape index: {}]
  %s6 = sld [smem:[#allocation0]]
  $region42: #{tpu_custom_call.1} parent=0
    _
  %s8 = ssub.s32 1, %s6
  %s9 = scalar_select 0, %s8, %s6
  $region1: #{tpu_custom_call.1} parent=0
    #allocation2 [shape = 'u8[8192]{0}', space=vmem, size = 0x2000, scoped, tag = 'input window, operand 0, single buffered']
    #allocation3 [shape = 's32[1]{0}', space=sflag, size = 0x4, scoped, tag = 'scoped memory for tpu_custom_call.1']
    #allocation4 [shape = 's32[1]{0}', space=sflag, size = 0x4, scoped, tag = 'scoped memory for tpu_custom_call.1']
    #allocation5 [shape = 'u8[65536]{0}', space=vmem, size = 0x10000, scoped, tag = 'input window, operand 1, single buffered']
    #allocation6 [shape = 's32[1]{0}', space=sflag, size = 0x4, scoped, tag = 'scoped memory for tpu_custom_call.1']
    #allocation7 [shape = 'u8[65536]{0}', space=vmem, size = 0x10000, scoped, tag = 'input window, operand 3, single buffered']
    #allocation8 [shape = 'u8[8192]{0}', space=vmem, size = 0x2000, scoped, tag = 'output window, operand 0, single buffered']
    %10 = vsyncpa [#allocation3], 0
    %11 = vsyncpa [#allocation6], 0
    %12 = vsyncpa [#allocation4], 0
    // Predicated region
    $region2: #{tpu_custom_call.1} parent=1 // pred_check
      _
    $region3: #{tpu_custom_call.1} parent=1 // pred_check_branch
      %14 = sbr.rel (0) target = $region5
    $region4: #{tpu_custom_call.1} parent=1 // pred_region
      %s16 = ssub.s32 256, 256
      %17 = vsyncadd [#allocation3], %s16
      %s18 = sshll.u32 [#allocation2], 4
      %s19 = int_to_ptr.vmem [resolvable:$true] %s18
      %24 = dma.hbm_to_vmem [thread:$0]  %s0, 256, %s19, [#allocation3], 128, 128, 8
    $region5: #{tpu_custom_call.1} parent=1 // pred_fallthru
      _
    // Predicated region
    $region6: #{tpu_custom_call.1} parent=1 // pred_check
      _
    $region7: #{tpu_custom_call.1} parent=1 // pred_check_branch
      %26 = sbr.rel (0) target = $region9
    $region8: #{tpu_custom_call.1} parent=1 // pred_region
      %s28 = ssub.s32 2048, 2048
      %29 = vsyncadd [#allocation6], %s28
      %s30 = sshll.u32 [#allocation5], 4
      %s31 = int_to_ptr.vmem [resolvable:$true] %s30
      %36 = dma.hbm_to_vmem [thread:$0]  %s1, 2048, %s31, [#allocation6], 128, 128, 8
    $region9: #{tpu_custom_call.1} parent=1 // pred_fallthru
      _
    // Predicated region
    $region10: #{tpu_custom_call.1} parent=1 // pred_check
      _
    $region11: #{tpu_custom_call.1} parent=1 // pred_check_branch
      %38 = sbr.rel (0) target = $region13
    $region12: #{tpu_custom_call.1} parent=1 // pred_region
      _
    $region13: #{tpu_custom_call.1} parent=1 // pred_fallthru
      _
    // Predicated region
    $region14: #{tpu_custom_call.1} parent=1 // pred_check
      _
    $region15: #{tpu_custom_call.1} parent=1 // pred_check_branch
      %40 = sbr.rel (0) target = $region17
    $region16: #{tpu_custom_call.1} parent=1 // pred_region
      %s42 = ssub.s32 2048, 2048
      %43 = vsyncadd [#allocation6], %s42
      %s44 = sshll.u32 [#allocation7], 4
      %s45 = int_to_ptr.vmem [resolvable:$true] %s44
      %50 = dma.hbm_to_vmem [thread:$0]  %s3, 2048, %s45, [#allocation6], 128, 128, 8
    $region17: #{tpu_custom_call.1} parent=1 // pred_fallthru
      _
    // Predicated region
    $region18: #{tpu_custom_call.1} parent=1 // pred_check
      _
    $region19: #{tpu_custom_call.1} parent=1 // pred_check_branch
      %52 = sbr.rel (0) target = $region21
    $region20: #{tpu_custom_call.1} parent=1 // pred_region
      _
    $region21: #{tpu_custom_call.1} parent=1 // pred_fallthru
      _
    // Predicated region
    $region22: #{tpu_custom_call.1} parent=1 // pred_check
      _
    $region23: #{tpu_custom_call.1} parent=1 // pred_check_branch
      %54 = sbr.rel (0) target = $region25
    $region24: #{tpu_custom_call.1} parent=1 // pred_region
      %55 = dma.done [#allocation3], 256
    $region25: #{tpu_custom_call.1} parent=1 // pred_fallthru
      _
    // Predicated region
    $region26: #{tpu_custom_call.1} parent=1 // pred_check
      _
    $region27: #{tpu_custom_call.1} parent=1 // pred_check_branch
      %57 = sbr.rel (0) target = $region29
    $region28: #{tpu_custom_call.1} parent=1 // pred_region
      %58 = dma.done [#allocation6], 2048
    $region29: #{tpu_custom_call.1} parent=1 // pred_fallthru
      _
    // Predicated region
    $region30: #{tpu_custom_call.1} parent=1 // pred_check
      _
    $region31: #{tpu_custom_call.1} parent=1 // pred_check_branch
      %60 = sbr.rel (0) target = $region33
    $region32: #{tpu_custom_call.1} parent=1 // pred_region
      %61 = dma.done [#allocation6], 2048
    $region33: #{tpu_custom_call.1} parent=1 // pred_fallthru
      _
    %v62 = vld [vmem:[#allocation2] sm:$0xff]
    %v63 = vld [vmem:[#allocation2 + $0x8] sm:$0xff]
    %v64 = vld [vmem:[#allocation5] sm:$0xff]
    %v65 = vld [vmem:[#allocation5 + $0x8] sm:$0xff]
    %v66 = vld [vmem:[#allocation5 + $0x10] sm:$0xff]
    %v67 = vld [vmem:[#allocation5 + $0x18] sm:$0xff]
    %v68 = vld [vmem:[#allocation5 + $0x20] sm:$0xff]
    %v69 = vld [vmem:[#allocation5 + $0x28] sm:$0xff]
    %v70 = vld [vmem:[#allocation5 + $0x30] sm:$0xff]
    %v71 = vld [vmem:[#allocation5 + $0x38] sm:$0xff]
    %v72 = vld [vmem:[#allocation5 + $0x40] sm:$0xff]
    %v73 = vld [vmem:[#allocation5 + $0x48] sm:$0xff]
    %v74 = vld [vmem:[#allocation5 + $0x50] sm:$0xff]
    %v75 = vld [vmem:[#allocation5 + $0x58] sm:$0xff]
    %v76 = vld [vmem:[#allocation5 + $0x60] sm:$0xff]
    %v77 = vld [vmem:[#allocation5 + $0x68] sm:$0xff]
    %v78 = vld [vmem:[#allocation5 + $0x70] sm:$0xff]
    %v79 = vld [vmem:[#allocation5 + $0x78] sm:$0xff]
    %v80 = vld [vmem:[%s2] sm:$0x1]
    %v82 = vlaneseq
    %v83 = vshrl.u32 %v82, 7
    %v84 = vsub.s32 0, %v83
    %v85 = vrot.slane %v80, %v84
    %87 = vmatprep.subr.mxu0 0.0
    %88 = vmatpush1.msra.mxu0 %v64
    %89 = vmatprep.subr.mxu0 0.0
    %90 = vmatpush1.msra.mxu0 %v65
    %91 = vmatprep.subr.mxu0 0.0
    %92 = vmatpush1.msra.mxu0 %v66
    %93 = vmatprep.subr.mxu0 0.0
    %94 = vmatpush1.msra.mxu0 %v67
    %95 = vmatprep.subr.mxu0 0.0
    %96 = vmatpush1.msra.mxu0 %v68
    %97 = vmatprep.subr.mxu0 0.0
    %98 = vmatpush1.msra.mxu0 %v69
    %99 = vmatprep.subr.mxu0 0.0
    %100 = vmatpush1.msra.mxu0 %v70
    %101 = vmatprep.subr.mxu0 0.0
    %102 = vmatpush1.msra.mxu0 %v71
    %103 = vmatprep.subr.mxu0 0.0
    %104 = vmatpush1.msra.mxu0 %v72
    %105 = vmatprep.subr.mxu0 0.0
    %106 = vmatpush1.msra.mxu0 %v73
    %107 = vmatprep.subr.mxu0 0.0
    %108 = vmatpush1.msra.mxu0 %v74
    %109 = vmatprep.subr.mxu0 0.0
    %110 = vmatpush1.msra.mxu0 %v75
    %111 = vmatprep.subr.mxu0 0.0
    %112 = vmatpush1.msra.mxu0 %v76
    %113 = vmatprep.subr.mxu0 0.0
    %114 = vmatpush1.msra.mxu0 %v77
    %115 = vmatprep.subr.mxu0 0.0
    %116 = vmatpush1.msra.mxu0 %v78
    %117 = vmatprep.subr.mxu0 0.0
    %118 = vmatpush1.msra.mxu0 %v79
    %119 = vmatprep.subr.mxu0 0.0
    %120 = vmatpush1.msra.mxu0 0.0
    %121 = vmatprep.subr.mxu0 0.0
    %122 = vmatpush1.msra.mxu0 0.0
    %123 = vmatprep.subr.mxu0 0.0
    %124 = vmatpush1.msra.mxu0 0.0
    %125 = vmatprep.subr.mxu0 0.0
    %126 = vmatpush1.msra.mxu0 0.0
    %127 = vmatprep.subr.mxu0 0.0
    %128 = vmatpush1.msra.mxu0 0.0
    %129 = vmatprep.subr.mxu0 0.0
    %130 = vmatpush1.msra.mxu0 0.0
    %131 = vmatprep.subr.mxu0 0.0
    %132 = vmatpush1.msra.mxu0 0.0
    %133 = vmatprep.subr.mxu0 0.0
    %134 = vmatpush1.msra.mxu0 0.0
    %135 = vmatprep.subr.mxu0 0.0
    %136 = vmatpush1.msra.mxu0 0.0
    %137 = vmatprep.subr.mxu0 0.0
    %138 = vmatpush1.msra.mxu0 0.0
    %139 = vmatprep.subr.mxu0 0.0
    %140 = vmatpush1.msra.mxu0 0.0
    %141 = vmatprep.subr.mxu0 0.0
    %142 = vmatpush1.msra.mxu0 0.0
    %143 = vmatprep.subr.mxu0 0.0
    %144 = vmatpush1.msra.mxu0 0.0
    %145 = vmatprep.subr.mxu0 0.0
    %146 = vmatpush1.msra.mxu0 0.0
    %147 = vmatprep.subr.mxu0 0.0
    %148 = vmatpush1.msra.mxu0 0.0
    %149 = vmatprep.subr.mxu0 0.0
    %150 = vmatpush1.msra.mxu0 0.0
    %151 = vmatprep.mubr.f32.mxu0 0.0
    %152 = vmatmul.mubr.f32.gmra.mrb[0].mxu0 %v62
    %v153 = vpop.f32.mrb[0].mxu0
    %v154 = vadd.f32 %v85, %v153
    %v155 = vpop.f32.mrb[0].mxu0
    %156 = vmatprep.mubr.f32.mxu0 0.0
    %157 = vmatmul.mubr.f32.gmra.mrb[0].mxu0 %v63
    %v158 = vpop.f32.mrb[0].mxu0
    %v159 = vadd.f32 %v85, %v158
    %v160 = vpop.f32.mrb[0].mxu0
    %161 = vdwg.mxu0
    %v162 = vmax.f32 %v154, 0.0
    %v163 = vmax.f32 %v159, 0.0
    %v164 = vld [vmem:[#allocation7] sm:$0xff]
    %v165 = vld [vmem:[#allocation7 + $0x8] sm:$0xff]
    %v166 = vld [vmem:[#allocation7 + $0x10] sm:$0xff]
    %v167 = vld [vmem:[#allocation7 + $0x18] sm:$0xff]
    %v168 = vld [vmem:[#allocation7 + $0x20] sm:$0xff]
    %v169 = vld [vmem:[#allocation7 + $0x28] sm:$0xff]
    %v170 = vld [vmem:[#allocation7 + $0x30] sm:$0xff]
    %v171 = vld [vmem:[#allocation7 + $0x38] sm:$0xff]
    %v172 = vld [vmem:[#allocation7 + $0x40] sm:$0xff]
    %v173 = vld [vmem:[#allocation7 + $0x48] sm:$0xff]
    %v174 = vld [vmem:[#allocation7 + $0x50] sm:$0xff]
    %v175 = vld [vmem:[#allocation7 + $0x58] sm:$0xff]
    %v176 = vld [vmem:[#allocation7 + $0x60] sm:$0xff]
    %v177 = vld [vmem:[#allocation7 + $0x68] sm:$0xff]
    %v178 = vld [vmem:[#allocation7 + $0x70] sm:$0xff]
    %v179 = vld [vmem:[#allocation7 + $0x78] sm:$0xff]
    %v180 = vld [vmem:[%s4] sm:$0x1]
    %v182 = vlaneseq
    %v183 = vshrl.u32 %v182, 7
    %v184 = vsub.s32 0, %v183
    %v185 = vrot.slane %v180, %v184
    %187 = vmatprep.subr.mxu0 0.0
    %188 = vmatpush1.msra.mxu0 %v164
    %189 = vmatprep.subr.mxu0 0.0
    %190 = vmatpush1.msra.mxu0 %v165
    %191 = vmatprep.subr.mxu0 0.0
    %192 = vmatpush1.msra.mxu0 %v166
    %193 = vmatprep.subr.mxu0 0.0
    %194 = vmatpush1.msra.mxu0 %v167
    %195 = vmatprep.subr.mxu0 0.0
    %196 = vmatpush1.msra.mxu0 %v168
    %197 = vmatprep.subr.mxu0 0.0
    %198 = vmatpush1.msra.mxu0 %v169
    %199 = vmatprep.subr.mxu0 0.0
    %200 = vmatpush1.msra.mxu0 %v170
    %201 = vmatprep.subr.mxu0 0.0
    %202 = vmatpush1.msra.mxu0 %v171
    %203 = vmatprep.subr.mxu0 0.0
    %204 = vmatpush1.msra.mxu0 %v172
    %205 = vmatprep.subr.mxu0 0.0
    %206 = vmatpush1.msra.mxu0 %v173
    %207 = vmatprep.subr.mxu0 0.0
    %208 = vmatpush1.msra.mxu0 %v174
    %209 = vmatprep.subr.mxu0 0.0
    %210 = vmatpush1.msra.mxu0 %v175
    %211 = vmatprep.subr.mxu0 0.0
    %212 = vmatpush1.msra.mxu0 %v176
    %213 = vmatprep.subr.mxu0 0.0
    %214 = vmatpush1.msra.mxu0 %v177
    %215 = vmatprep.subr.mxu0 0.0
    %216 = vmatpush1.msra.mxu0 %v178
    %217 = vmatprep.subr.mxu0 0.0
    %218 = vmatpush1.msra.mxu0 %v179
    %219 = vmatprep.subr.mxu0 0.0
    %220 = vmatpush1.msra.mxu0 0.0
    %221 = vmatprep.subr.mxu0 0.0
    %222 = vmatpush1.msra.mxu0 0.0
    %223 = vmatprep.subr.mxu0 0.0
    %224 = vmatpush1.msra.mxu0 0.0
    %225 = vmatprep.subr.mxu0 0.0
    %226 = vmatpush1.msra.mxu0 0.0
    %227 = vmatprep.subr.mxu0 0.0
    %228 = vmatpush1.msra.mxu0 0.0
    %229 = vmatprep.subr.mxu0 0.0
    %230 = vmatpush1.msra.mxu0 0.0
    %231 = vmatprep.subr.mxu0 0.0
    %232 = vmatpush1.msra.mxu0 0.0
    %233 = vmatprep.subr.mxu0 0.0
    %234 = vmatpush1.msra.mxu0 0.0
    %235 = vmatprep.subr.mxu0 0.0
    %236 = vmatpush1.msra.mxu0 0.0
    %237 = vmatprep.subr.mxu0 0.0
    %238 = vmatpush1.msra.mxu0 0.0
    %239 = vmatprep.subr.mxu0 0.0
    %240 = vmatpush1.msra.mxu0 0.0
    %241 = vmatprep.subr.mxu0 0.0
    %242 = vmatpush1.msra.mxu0 0.0
    %243 = vmatprep.subr.mxu0 0.0
    %244 = vmatpush1.msra.mxu0 0.0
    %245 = vmatprep.subr.mxu0 0.0
    %246 = vmatpush1.msra.mxu0 0.0
    %247 = vmatprep.subr.mxu0 0.0
    %248 = vmatpush1.msra.mxu0 0.0
    %249 = vmatprep.subr.mxu0 0.0
    %250 = vmatpush1.msra.mxu0 0.0
    %251 = vmatprep.mubr.f32.mxu0 0.0
    %252 = vmatmul.mubr.f32.gmra.mrb[0].mxu0 %v162
    %v253 = vpop.f32.mrb[0].mxu0
    %v254 = vadd.f32 %v185, %v253
    %v255 = vpop.f32.mrb[0].mxu0
    %256 = vmatprep.mubr.f32.mxu0 0.0
    %257 = vmatmul.mubr.f32.gmra.mrb[0].mxu0 %v163
    %v258 = vpop.f32.mrb[0].mxu0
    %v259 = vadd.f32 %v185, %v258
    %v260 = vpop.f32.mrb[0].mxu0
    %261 = vdwg.mxu0
    %v262 = vadd.f32 %v254, %v62
    %v263 = vadd.f32 %v259, %v63
    %264 = vst [vmem:[#allocation8] sm:$0xff] %v262
    %265 = vst [vmem:[#allocation8 + $0x8] sm:$0xff] %v263
    // Predicated region
    $region34: #{tpu_custom_call.1} parent=1 // pred_check
      _
    $region35: #{tpu_custom_call.1} parent=1 // pred_check_branch
      %267 = sbr.rel (0) target = $region37
    $region36: #{tpu_custom_call.1} parent=1 // pred_region
      %s269 = ssub.s32 256, 256
      %270 = vsyncadd [#allocation4], %s269
      %s271 = sshll.u32 [#allocation8], 4
      %s272 = int_to_ptr.vmem [resolvable:$true] %s271
      %277 = dma.vmem_to_hbm [thread:$0]  %s272, 256, %s5, [#allocation4], 128, 128, 8
    $region37: #{tpu_custom_call.1} parent=1 // pred_fallthru
      _
    // Predicated region
    $region38: #{tpu_custom_call.1} parent=1 // pred_check
      _
    $region39: #{tpu_custom_call.1} parent=1 // pred_check_branch
      %279 = sbr.rel (0) target = $region41
    $region40: #{tpu_custom_call.1} parent=1 // pred_region
      %280 = dma.done [#allocation4], 256
    $region41: #{tpu_custom_call.1} parent=1 // pred_fallthru
      _
    %281 = vsyncpa [#allocation3], 1
    %282 = vsyncpa [#allocation6], 1
    %283 = vsyncpa [#allocation4], 1

// kernel: tpu_custom_call.1
$region0: #{tpu_custom_call.1}
  #allocation0 [shape = 'u32[]', space=smem, size = 0x4, offset = 0x4, fixed_abs, tag = 'smem constant byte address 0x4 - core index']
  #allocation1 [shape = 'u32[144,128]{1,0:T(1,128)}', space=vmem, size = 0x12000, scoped, tag = 'internal scratch']
  %s0 = inlined_call_operand.hbm [shape: f32[16,128], index: 0, kind: input, shape index: {}]
  %s1 = inlined_call_operand.hbm [shape: f32[128,128], index: 1, kind: input, shape index: {}]
  %s2 = inlined_call_operand.vmem [shape: f32[1,128], index: 2, kind: input, shape index: {}]
  %s3 = inlined_call_operand.hbm [shape: f32[128,128], index: 3, kind: input, shape index: {}]
  %s4 = inlined_call_operand.vmem [shape: f32[1,128], index: 4, kind: input, shape index: {}]
  %s5 = inlined_call_operand.hbm [shape: f32[16,128], index: 5, kind: output, shape index: {}]
  %s6 = sld [smem:[#allocation0]]
  $region42: #{tpu_custom_call.1} parent=0
    _
  %s8 = ssub.s32 1, %s6
  %s9 = scalar_select 0, %s8, %s6
  $region1: #{tpu_custom_call.1} parent=0
    #allocation2 [shape = 'u8[8192]{0}', space=vmem, size = 0x2000, scoped, tag = 'input window, operand 0, single buffered']
    #allocation3 [shape = 's32[1]{0}', space=sflag, size = 0x4, scoped, tag = 'scoped memory for tpu_custom_call.1']
    #allocation4 [shape = 's32[1]{0}', space=sflag, size = 0x4, scoped, tag = 'scoped memory for tpu_custom_call.1']
    #allocation5 [shape = 'u8[65536]{0}', space=vmem, size = 0x10000, scoped, tag = 'input window, operand 1, single buffered']
    #allocation6 [shape = 's32[1]{0}', space=sflag, size = 0x4, scoped, tag = 'scoped memory for tpu_custom_call.1']
    #allocation7 [shape = 'u8[65536]{0}', space=vmem, size = 0x10000, scoped, tag = 'input window, operand 3, single buffered']
    #allocation8 [shape = 'u8[8192]{0}', space=vmem, size = 0x2000, scoped, tag = 'output window, operand 0, single buffered']
    %10 = vsyncpa [#allocation3], 0
    %11 = vsyncpa [#allocation6], 0
    %12 = vsyncpa [#allocation4], 0
    // Predicated region
    $region2: #{tpu_custom_call.1} parent=1 // pred_check
      _
    $region3: #{tpu_custom_call.1} parent=1 // pred_check_branch
      %14 = sbr.rel (0) target = $region5
    $region4: #{tpu_custom_call.1} parent=1 // pred_region
      %s16 = ssub.s32 256, 256
      %17 = vsyncadd [#allocation3], %s16
      %s18 = sshll.u32 [#allocation2], 4
      %s19 = int_to_ptr.vmem [resolvable:$true] %s18
      %24 = dma.hbm_to_vmem [thread:$0]  %s0, 256, %s19, [#allocation3], 128, 128, 8
    $region5: #{tpu_custom_call.1} parent=1 // pred_fallthru
      _
    // Predicated region
    $region6: #{tpu_custom_call.1} parent=1 // pred_check
      _
    $region7: #{tpu_custom_call.1} parent=1 // pred_check_branch
      %26 = sbr.rel (0) target = $region9
    $region8: #{tpu_custom_call.1} parent=1 // pred_region
      %s28 = ssub.s32 2048, 2048
      %29 = vsyncadd [#allocation6], %s28
      %s30 = sshll.u32 [#allocation5], 4
      %s31 = int_to_ptr.vmem [resolvable:$true] %s30
      %36 = dma.hbm_to_vmem [thread:$0]  %s1, 2048, %s31, [#allocation6], 128, 128, 8
    $region9: #{tpu_custom_call.1} parent=1 // pred_fallthru
      _
    // Predicated region
    $region10: #{tpu_custom_call.1} parent=1 // pred_check
      _
    $region11: #{tpu_custom_call.1} parent=1 // pred_check_branch
      %38 = sbr.rel (0) target = $region13
    $region12: #{tpu_custom_call.1} parent=1 // pred_region
      _
    $region13: #{tpu_custom_call.1} parent=1 // pred_fallthru
      _
    // Predicated region
    $region14: #{tpu_custom_call.1} parent=1 // pred_check
      _
    $region15: #{tpu_custom_call.1} parent=1 // pred_check_branch
      %40 = sbr.rel (0) target = $region17
    $region16: #{tpu_custom_call.1} parent=1 // pred_region
      %s42 = ssub.s32 2048, 2048
      %43 = vsyncadd [#allocation6], %s42
      %s44 = sshll.u32 [#allocation7], 4
      %s45 = int_to_ptr.vmem [resolvable:$true] %s44
      %50 = dma.hbm_to_vmem [thread:$0]  %s3, 2048, %s45, [#allocation6], 128, 128, 8
    $region17: #{tpu_custom_call.1} parent=1 // pred_fallthru
      _
    // Predicated region
    $region18: #{tpu_custom_call.1} parent=1 // pred_check
      _
    $region19: #{tpu_custom_call.1} parent=1 // pred_check_branch
      %52 = sbr.rel (0) target = $region21
    $region20: #{tpu_custom_call.1} parent=1 // pred_region
      _
    $region21: #{tpu_custom_call.1} parent=1 // pred_fallthru
      _
    // Predicated region
    $region22: #{tpu_custom_call.1} parent=1 // pred_check
      _
    $region23: #{tpu_custom_call.1} parent=1 // pred_check_branch
      %54 = sbr.rel (0) target = $region25
    $region24: #{tpu_custom_call.1} parent=1 // pred_region
      %55 = dma.done [#allocation3], 256
    $region25: #{tpu_custom_call.1} parent=1 // pred_fallthru
      _
    // Predicated region
    $region26: #{tpu_custom_call.1} parent=1 // pred_check
      _
    $region27: #{tpu_custom_call.1} parent=1 // pred_check_branch
      %57 = sbr.rel (0) target = $region29
    $region28: #{tpu_custom_call.1} parent=1 // pred_region
      %58 = dma.done [#allocation6], 2048
    $region29: #{tpu_custom_call.1} parent=1 // pred_fallthru
      _
    // Predicated region
    $region30: #{tpu_custom_call.1} parent=1 // pred_check
      _
    $region31: #{tpu_custom_call.1} parent=1 // pred_check_branch
      %60 = sbr.rel (0) target = $region33
    $region32: #{tpu_custom_call.1} parent=1 // pred_region
      %61 = dma.done [#allocation6], 2048
    $region33: #{tpu_custom_call.1} parent=1 // pred_fallthru
      _
    %v62 = vld [vmem:[#allocation2] sm:$0xff]
    %v63 = vld [vmem:[#allocation2 + $0x8] sm:$0xff]
    %v64 = vld [vmem:[#allocation5] sm:$0xff]
    %v65 = vld [vmem:[#allocation5 + $0x8] sm:$0xff]
    %v66 = vld [vmem:[#allocation5 + $0x10] sm:$0xff]
    %v67 = vld [vmem:[#allocation5 + $0x18] sm:$0xff]
    %v68 = vld [vmem:[#allocation5 + $0x20] sm:$0xff]
    %v69 = vld [vmem:[#allocation5 + $0x28] sm:$0xff]
    %v70 = vld [vmem:[#allocation5 + $0x30] sm:$0xff]
    %v71 = vld [vmem:[#allocation5 + $0x38] sm:$0xff]
    %v72 = vld [vmem:[#allocation5 + $0x40] sm:$0xff]
    %v73 = vld [vmem:[#allocation5 + $0x48] sm:$0xff]
    %v74 = vld [vmem:[#allocation5 + $0x50] sm:$0xff]
    %v75 = vld [vmem:[#allocation5 + $0x58] sm:$0xff]
    %v76 = vld [vmem:[#allocation5 + $0x60] sm:$0xff]
    %v77 = vld [vmem:[#allocation5 + $0x68] sm:$0xff]
    %v78 = vld [vmem:[#allocation5 + $0x70] sm:$0xff]
    %v79 = vld [vmem:[#allocation5 + $0x78] sm:$0xff]
    %v80 = vld [vmem:[%s2] sm:$0x1]
    %v82 = vlaneseq
    %v83 = vshrl.u32 %v82, 7
    %v84 = vsub.s32 0, %v83
    %v85 = vrot.slane %v80, %v84
    %87 = vmatprep.subr.mxu0 0.0
    %88 = vmatpush1.msra.mxu0 %v64
    %89 = vmatprep.subr.mxu0 0.0
    %90 = vmatpush1.msra.mxu0 %v65
    %91 = vmatprep.subr.mxu0 0.0
    %92 = vmatpush1.msra.mxu0 %v66
    %93 = vmatprep.subr.mxu0 0.0
    %94 = vmatpush1.msra.mxu0 %v67
    %95 = vmatprep.subr.mxu0 0.0
    %96 = vmatpush1.msra.mxu0 %v68
    %97 = vmatprep.subr.mxu0 0.0
    %98 = vmatpush1.msra.mxu0 %v69
    %99 = vmatprep.subr.mxu0 0.0
    %100 = vmatpush1.msra.mxu0 %v70
    %101 = vmatprep.subr.mxu0 0.0
    %102 = vmatpush1.msra.mxu0 %v71
    %103 = vmatprep.subr.mxu0 0.0
    %104 = vmatpush1.msra.mxu0 %v72
    %105 = vmatprep.subr.mxu0 0.0
    %106 = vmatpush1.msra.mxu0 %v73
    %107 = vmatprep.subr.mxu0 0.0
    %108 = vmatpush1.msra.mxu0 %v74
    %109 = vmatprep.subr.mxu0 0.0
    %110 = vmatpush1.msra.mxu0 %v75
    %111 = vmatprep.subr.mxu0 0.0
    %112 = vmatpush1.msra.mxu0 %v76
    %113 = vmatprep.subr.mxu0 0.0
    %114 = vmatpush1.msra.mxu0 %v77
    %115 = vmatprep.subr.mxu0 0.0
    %116 = vmatpush1.msra.mxu0 %v78
    %117 = vmatprep.subr.mxu0 0.0
    %118 = vmatpush1.msra.mxu0 %v79
    %119 = vmatprep.subr.mxu0 0.0
    %120 = vmatpush1.msra.mxu0 0.0
    %121 = vmatprep.subr.mxu0 0.0
    %122 = vmatpush1.msra.mxu0 0.0
    %123 = vmatprep.subr.mxu0 0.0
    %124 = vmatpush1.msra.mxu0 0.0
    %125 = vmatprep.subr.mxu0 0.0
    %126 = vmatpush1.msra.mxu0 0.0
    %127 = vmatprep.subr.mxu0 0.0
    %128 = vmatpush1.msra.mxu0 0.0
    %129 = vmatprep.subr.mxu0 0.0
    %130 = vmatpush1.msra.mxu0 0.0
    %131 = vmatprep.subr.mxu0 0.0
    %132 = vmatpush1.msra.mxu0 0.0
    %133 = vmatprep.subr.mxu0 0.0
    %134 = vmatpush1.msra.mxu0 0.0
    %135 = vmatprep.subr.mxu0 0.0
    %136 = vmatpush1.msra.mxu0 0.0
    %137 = vmatprep.subr.mxu0 0.0
    %138 = vmatpush1.msra.mxu0 0.0
    %139 = vmatprep.subr.mxu0 0.0
    %140 = vmatpush1.msra.mxu0 0.0
    %141 = vmatprep.subr.mxu0 0.0
    %142 = vmatpush1.msra.mxu0 0.0
    %143 = vmatprep.subr.mxu0 0.0
    %144 = vmatpush1.msra.mxu0 0.0
    %145 = vmatprep.subr.mxu0 0.0
    %146 = vmatpush1.msra.mxu0 0.0
    %147 = vmatprep.subr.mxu0 0.0
    %148 = vmatpush1.msra.mxu0 0.0
    %149 = vmatprep.subr.mxu0 0.0
    %150 = vmatpush1.msra.mxu0 0.0
    %151 = vmatprep.mubr.f32.mxu0 0.0
    %152 = vmatmul.mubr.f32.gmra.mrb[0].mxu0 %v62
    %v153 = vpop.f32.mrb[0].mxu0
    %v154 = vadd.f32 %v85, %v153
    %v155 = vpop.f32.mrb[0].mxu0
    %156 = vmatprep.mubr.f32.mxu0 0.0
    %157 = vmatmul.mubr.f32.gmra.mrb[0].mxu0 %v63
    %v158 = vpop.f32.mrb[0].mxu0
    %v159 = vadd.f32 %v85, %v158
    %v160 = vpop.f32.mrb[0].mxu0
    %161 = vdwg.mxu0
    %v162 = vmax.f32 %v154, 0.0
    %v163 = vmax.f32 %v159, 0.0
    %v164 = vld [vmem:[#allocation7] sm:$0xff]
    %v165 = vld [vmem:[#allocation7 + $0x8] sm:$0xff]
    %v166 = vld [vmem:[#allocation7 + $0x10] sm:$0xff]
    %v167 = vld [vmem:[#allocation7 + $0x18] sm:$0xff]
    %v168 = vld [vmem:[#allocation7 + $0x20] sm:$0xff]
    %v169 = vld [vmem:[#allocation7 + $0x28] sm:$0xff]
    %v170 = vld [vmem:[#allocation7 + $0x30] sm:$0xff]
    %v171 = vld [vmem:[#allocation7 + $0x38] sm:$0xff]
    %v172 = vld [vmem:[#allocation7 + $0x40] sm:$0xff]
    %v173 = vld [vmem:[#allocation7 + $0x48] sm:$0xff]
    %v174 = vld [vmem:[#allocation7 + $0x50] sm:$0xff]
    %v175 = vld [vmem:[#allocation7 + $0x58] sm:$0xff]
    %v176 = vld [vmem:[#allocation7 + $0x60] sm:$0xff]
    %v177 = vld [vmem:[#allocation7 + $0x68] sm:$0xff]
    %v178 = vld [vmem:[#allocation7 + $0x70] sm:$0xff]
    %v179 = vld [vmem:[#allocation7 + $0x78] sm:$0xff]
    %v180 = vld [vmem:[%s4] sm:$0x1]
    %v182 = vlaneseq
    %v183 = vshrl.u32 %v182, 7
    %v184 = vsub.s32 0, %v183
    %v185 = vrot.slane %v180, %v184
    %187 = vmatprep.subr.mxu0 0.0
    %188 = vmatpush1.msra.mxu0 %v164
    %189 = vmatprep.subr.mxu0 0.0
    %190 = vmatpush1.msra.mxu0 %v165
    %191 = vmatprep.subr.mxu0 0.0
    %192 = vmatpush1.msra.mxu0 %v166
    %193 = vmatprep.subr.mxu0 0.0
    %194 = vmatpush1.msra.mxu0 %v167
    %195 = vmatprep.subr.mxu0 0.0
    %196 = vmatpush1.msra.mxu0 %v168
    %197 = vmatprep.subr.mxu0 0.0
    %198 = vmatpush1.msra.mxu0 %v169
    %199 = vmatprep.subr.mxu0 0.0
    %200 = vmatpush1.msra.mxu0 %v170
    %201 = vmatprep.subr.mxu0 0.0
    %202 = vmatpush1.msra.mxu0 %v171
    %203 = vmatprep.subr.mxu0 0.0
    %204 = vmatpush1.msra.mxu0 %v172
    %205 = vmatprep.subr.mxu0 0.0
    %206 = vmatpush1.msra.mxu0 %v173
    %207 = vmatprep.subr.mxu0 0.0
    %208 = vmatpush1.msra.mxu0 %v174
    %209 = vmatprep.subr.mxu0 0.0
    %210 = vmatpush1.msra.mxu0 %v175
    %211 = vmatprep.subr.mxu0 0.0
    %212 = vmatpush1.msra.mxu0 %v176
    %213 = vmatprep.subr.mxu0 0.0
    %214 = vmatpush1.msra.mxu0 %v177
    %215 = vmatprep.subr.mxu0 0.0
    %216 = vmatpush1.msra.mxu0 %v178
    %217 = vmatprep.subr.mxu0 0.0
    %218 = vmatpush1.msra.mxu0 %v179
    %219 = vmatprep.subr.mxu0 0.0
    %220 = vmatpush1.msra.mxu0 0.0
    %221 = vmatprep.subr.mxu0 0.0
    %222 = vmatpush1.msra.mxu0 0.0
    %223 = vmatprep.subr.mxu0 0.0
    %224 = vmatpush1.msra.mxu0 0.0
    %225 = vmatprep.subr.mxu0 0.0
    %226 = vmatpush1.msra.mxu0 0.0
    %227 = vmatprep.subr.mxu0 0.0
    %228 = vmatpush1.msra.mxu0 0.0
    %229 = vmatprep.subr.mxu0 0.0
    %230 = vmatpush1.msra.mxu0 0.0
    %231 = vmatprep.subr.mxu0 0.0
    %232 = vmatpush1.msra.mxu0 0.0
    %233 = vmatprep.subr.mxu0 0.0
    %234 = vmatpush1.msra.mxu0 0.0
    %235 = vmatprep.subr.mxu0 0.0
    %236 = vmatpush1.msra.mxu0 0.0
    %237 = vmatprep.subr.mxu0 0.0
    %238 = vmatpush1.msra.mxu0 0.0
    %239 = vmatprep.subr.mxu0 0.0
    %240 = vmatpush1.msra.mxu0 0.0
    %241 = vmatprep.subr.mxu0 0.0
    %242 = vmatpush1.msra.mxu0 0.0
    %243 = vmatprep.subr.mxu0 0.0
    %244 = vmatpush1.msra.mxu0 0.0
    %245 = vmatprep.subr.mxu0 0.0
    %246 = vmatpush1.msra.mxu0 0.0
    %247 = vmatprep.subr.mxu0 0.0
    %248 = vmatpush1.msra.mxu0 0.0
    %249 = vmatprep.subr.mxu0 0.0
    %250 = vmatpush1.msra.mxu0 0.0
    %251 = vmatprep.mubr.f32.mxu0 0.0
    %252 = vmatmul.mubr.f32.gmra.mrb[0].mxu0 %v162
    %v253 = vpop.f32.mrb[0].mxu0
    %v254 = vadd.f32 %v185, %v253
    %v255 = vpop.f32.mrb[0].mxu0
    %256 = vmatprep.mubr.f32.mxu0 0.0
    %257 = vmatmul.mubr.f32.gmra.mrb[0].mxu0 %v163
    %v258 = vpop.f32.mrb[0].mxu0
    %v259 = vadd.f32 %v185, %v258
    %v260 = vpop.f32.mrb[0].mxu0
    %261 = vdwg.mxu0
    %v262 = vadd.f32 %v254, %v62
    %v263 = vadd.f32 %v259, %v63
    %264 = vst [vmem:[#allocation8] sm:$0xff] %v262
    %265 = vst [vmem:[#allocation8 + $0x8] sm:$0xff] %v263
    // Predicated region
    $region34: #{tpu_custom_call.1} parent=1 // pred_check
      _
    $region35: #{tpu_custom_call.1} parent=1 // pred_check_branch
      %267 = sbr.rel (0) target = $region37
    $region36: #{tpu_custom_call.1} parent=1 // pred_region
      %s269 = ssub.s32 256, 256
      %270 = vsyncadd [#allocation4], %s269
      %s271 = sshll.u32 [#allocation8], 4
      %s272 = int_to_ptr.vmem [resolvable:$true] %s271
      %277 = dma.vmem_to_hbm [thread:$0]  %s272, 256, %s5, [#allocation4], 128, 128, 8
    $region37: #{tpu_custom_call.1} parent=1 // pred_fallthru
      _
    // Predicated region
    $region38: #{tpu_custom_call.1} parent=1 // pred_check
      _
    $region39: #{tpu_custom_call.1} parent=1 // pred_check_branch
      %279 = sbr.rel (0) target = $region41
    $region40: #{tpu_custom_call.1} parent=1 // pred_region
      %280 = dma.done [#allocation4], 256
    $region41: #{tpu_custom_call.1} parent=1 // pred_fallthru
      _
    %281 = vsyncpa [#allocation3], 1
    %282 = vsyncpa [#allocation6], 1
    %283 = vsyncpa [#allocation4], 1

</llo_original>
